<compile_context>
chip_gen: v5e
topology: v5e:2x2
jax: 0.10.0
libtpu: 0.0.40
codegen_flags: <defaults>
</compile_context>

<pallas_src>
import functools

import numpy as np
import jax
import jax.numpy as jnp
from jax.experimental import pallas as pl
from jax.experimental.pallas import tpu as pltpu


def _round_up(x, m):
    return ((x + m - 1) // m) * m


def _pick_tile(bs):
    """Batch (lane) tile: multiple of 128, >=2 grid steps when bs > 128,
    chosen to balance padding waste against ~0.35us per-step overhead."""
    if bs <= 128:
        return bs  # single block; block dims == full array dims is always legal
    best_tb, best_cost = 128, None
    for tb in range(128, 1025, 128):
        if tb >= bs:          # would collapse the grid to one step (bad for v7x megacore)
            break
        steps = pl.cdiv(bs, tb)
        cost = (steps * tb - bs) + 1024 * steps   # padding waste + step overhead proxy
        if best_cost is None or cost <= best_cost:
            best_tb, best_cost = tb, cost
    return best_tb


def _psd_kernel(*refs, num_hidden, act, half):
    """One batch tile of the full forward pass (batch on the 128-lane axis).

    refs layout:
      refs[0]                  : x tile, native layout            (tb, d0)
      refs[1], refs[2]         : W0e (d1+1, d0), b0e (d1+1, 1)    [ones-row producer]
      refs[3 .. 1+num_hidden]  : W1e .. W_{nh-1}e                 bias folded, ones row carried
      refs[2+num_hidden]       : W_AB (2*half, d_last+1)          merged A/B gather + bias col
      refs[3+num_hidden]       : R_e  (n^2, half)                 reduce + eps column
      refs[-1]                 : output D_flat tile               (n^2, tb)
    """
    x_ref = refs[0]
    d_ref = refs[-1]
    p = refs[1:-1]

    # First layer: contract the feature axes of W0e (d1+1, d0) and x (tb, d0)
    # so the MXU consumes the transposed operand directly -> (d1+1, tb).
    h = act(jax.lax.dot_general(
        p[0][...], x_ref[...],
        dimension_numbers=(((1,), (1,)), ((), ())),
        preferred_element_type=jnp.float32) + p[1][...])

    # Remaining hidden layers: bias already folded into the weight matrix
    # (h carries an exact ones row), so each layer is one matmul + sigmoid.
    for i in range(1, num_hidden):
        h = act(jnp.dot(p[1 + i][...], h, preferred_element_type=jnp.float32))

    w_ab = p[1 + num_hidden][...]     # (2*half, d_last+1)
    r_e = p[2 + num_hidden][...]      # (n^2, half)

    # Single merged matmul for both L-gathers; sublane-aligned static split.
    ab = jnp.dot(w_ab, h, preferred_element_type=jnp.float32)        # (2*half, tb)
    prod = ab[:half] * ab[half:]                                      # (half, tb)
    # D_flat[i*n+k, :] = sum_j L[i*n+j, :] * L[k*n+j, :]  (+ eps via the ones row)
    d_ref[...] = jnp.dot(r_e, prod, preferred_element_type=jnp.float32)


def build_psd(dims, activation="sigmoid", gain=1.0, eps=0.01, seed=0):
    """Deterministic parameters + a jitted Pallas forward fn for the PSD net."""
    assert activation == "sigmoid"
    assert len(dims) >= 2
    act = jax.nn.sigmoid

    n = dims[-1]
    off_dim = (n * n - n) // 2
    n2, n3 = n * n, n * n * n
    d0 = dims[0]
    d_last_in = dims[-1]
    d_last_out = n + off_dim

    hidden_dims = [(dims[i + 1], dims[i]) for i in range(len(dims) - 1)]
    num_hidden = len(hidden_dims)

    # ---- deterministic parameter init (orthogonal weights, uniform biases) ----
    # TODO(synk): jax orthogonal init will not bit-match torch.nn.init.orthogonal_.
    key = jax.random.PRNGKey(seed)
    raw_hidden = []
    for dout, din in hidden_dims:
        key, kw, kb = jax.random.split(key, 3)
        w = jax.nn.initializers.orthogonal(scale=gain)(kw, (dout, din), jnp.float32)
        bound = 1.0 / np.sqrt(din)
        b = jax.random.uniform(kb, (dout,), jnp.float32, -bound, bound)
        raw_hidden.append((np.asarray(w), np.asarray(b)))

    key, kw, kb = jax.random.split(key, 3)
    w_last = np.asarray(jax.nn.initializers.orthogonal(scale=1.0)(
        kw, (d_last_out, d_last_in), jnp.float32))
    bound = 1.0 / np.sqrt(d_last_in)
    b_last = np.asarray(jax.random.uniform(kb, (d_last_out,), jnp.float32, -bound, bound))

    # ---- constant scatter / gather / reduce matrices (exact 0/1 numpy folding) ----
    S = np.zeros((d_last_out, n2), np.float32)                # z -> L_flat scatter
    S[np.arange(n), np.arange(n) * (n + 1)] = 1.0
    ind = np.tril_indices(n, k=-1)
    flat_ind = np.ravel_multi_index(ind, (n, n))
    S[n + np.arange(off_dim), flat_ind] = 1.0

    G1 = np.zeros((n3, n2), np.float32)
    G2 = np.zeros((n3, n2), np.float32)
    R = np.zeros((n2, n3), np.float32)
    for i in range(n):
        for k in range(n):
            for j in range(n):
                row = (i * n + k) * n + j
                G1[row, i * n + j] = 1.0
                G2[row, k * n + j] = 1.0
                R[i * n + k, row] = 1.0

    L_w = S.T @ w_last                                        # (n2, d_last_in), exact copies
    L_b = S.T @ b_last                                        # (n2,)

    BIG = 100.0          # sigmoid(100.0) == 1.0 exactly in f32 -> exact ones row for bias folding
    half = _round_up(n3 + 1, 8)   # per-half rows: n3 real + 1 constant-one + sublane pad

    # Merged tail matrix [A-part; B-part], bias folded into an extra input column,
    # plus a constant-1 row per half (row n3) so R_e can carry eps.
    W_AB = np.zeros((2 * half, d_last_in + 1), np.float32)
    W_AB[:n3, :d_last_in] = G1 @ L_w
    W_AB[:n3, d_last_in] = G1 @ L_b
    W_AB[n3, d_last_in] = 1.0
    W_AB[half:half + n3, :d_last_in] = G2 @ L_w
    W_AB[half:half + n3, d_last_in] = G2 @ L_b
    W_AB[half + n3, d_last_in] = 1.0

    R_e = np.zeros((n2, half), np.float32)
    R_e[:, :n3] = R
    R_e[np.arange(n) * (n + 1), n3] = eps                     # eps on the diagonal

    # Hidden layers with the ones-row / bias folding.
    w0, b0 = raw_hidden[0]
    w0e = np.concatenate([w0, np.zeros((1, w0.shape[1]), np.float32)], axis=0)
    b0e = np.concatenate([b0, np.array([BIG], np.float32)]).reshape(-1, 1)
    operands = [jnp.asarray(w0e), jnp.asarray(b0e)]
    for i in range(1, num_hidden):
        wi, bi = raw_hidden[i]
        dout, din = wi.shape
        wie = np.zeros((dout + 1, din + 1), np.float32)
        wie[:dout, :din] = wi
        wie[:dout, din] = bi
        wie[dout, din] = BIG
        operands.append(jnp.asarray(wie))
    operands += [jnp.asarray(W_AB), jnp.asarray(R_e)]

    kernel = functools.partial(_psd_kernel, num_hidden=num_hidden, act=act, half=half)

    # rough per-batch-element cost numbers (advisory, for XLA's scheduler)
    flops_pe = 2 * (hidden_dims[0][0] + 1) * d0
    for i in range(1, num_hidden):
        flops_pe += 2 * (hidden_dims[i][0] + 1) * (hidden_dims[i][1] + 1)
    flops_pe += 2 * (2 * half) * (d_last_in + 1) + half + 2 * n2 * half
    trans_pe = sum(dout + 1 for dout, _ in hidden_dims)
    param_bytes = int(sum(int(np.prod(a.shape)) for a in operands)) * 4

    @functools.partial(jax.jit, static_argnames=("flat_output",))
    def forward(x, flat_output=False):
        # NOTE: tb depends on the (static) batch size, so each distinct batch
        # size gets its own compiled specialization — inherent to jit.
        bs = x.shape[0]
        tb = _pick_tile(bs)
        grid = (pl.cdiv(bs, tb),)

        const_specs = [pl.BlockSpec(a.shape, lambda i: (0, 0)) for a in operands]
        out = pl.pallas_call(
            kernel,
            out_shape=jax.ShapeDtypeStruct((n2, bs), jnp.float32),
            grid=grid,
            in_specs=[pl.BlockSpec((tb, d0), lambda i: (i, 0))] + const_specs,
            out_specs=pl.BlockSpec((n2, tb), lambda i: (0, i)),
            compiler_params=pltpu.CompilerParams(
                dimension_semantics=("parallel",)),
            cost_estimate=pl.CostEstimate(
                flops=flops_pe * bs,
                transcendentals=trans_pe * bs,
                bytes_accessed=4 * bs * (d0 + n2) + param_bytes),
        )(x, *operands)

        if flat_output:
            # Lane-dense D_flat[i*n + k, b]; consumers that can take this
            # layout skip the transpose HBM pass below.
            return out
        # Module contract: (bs, n, n) with D[b, i, k] = out[i*n + k, b].
        return out.T.reshape(bs, n, n)

    # ---- pure-JAX reference (row layout, mirrors the PyTorch forward) ----
    S_j = jnp.asarray(S)
    raw_hidden_j = [(jnp.asarray(w), jnp.asarray(b)) for w, b in raw_hidden]
    w_last_j = jnp.asarray(w_last)
    b_last_j = jnp.asarray(b_last)

    def forward_ref(x):
        h = x
        for w, b in raw_hidden_j:
            h = act(h @ w.T + b)
        z = h @ w_last_j.T + b_last_j
        L = (z @ S_j).reshape(x.shape[0], n, n)
        D = jnp.einsum("bij,bkj->bik", L, L)
        return D + jnp.eye(n, dtype=jnp.float32) * eps

    return forward, forward_ref


if __name__ == "__main__":
    # dims: [input_dim, hidden_dim, diag_dim] -> D is (bs, diag_dim, diag_dim)
    dims = [16, 32, 4]

    forward, forward_ref = build_psd(dims, activation="sigmoid", gain=1.0)

    # bs=8   : single full-array block (tiny-batch path)
    # bs=300 : 2-step grid (megacore on v7x) with a ragged last batch tile
    for bs in (8, 300):
        x = jax.random.normal(jax.random.PRNGKey(0), (bs, dims[0]), jnp.float32)

        D = forward(x)
        jax.block_until_ready(D)

        D_ref = forward_ref(x)
        assert D.shape == (bs, dims[-1], dims[-1])
        np.testing.assert_allclose(np.asarray(D), np.asarray(D_ref),
                                   rtol=1e-5, atol=1e-5)

    print("KERNEL_OK")
</pallas_src>

<mosaic_0001>
module attributes {stable_mosaic.version = 11 : i64} {
  func.func @_psd_kernel(%arg0: i32, %arg1: memref<8x16xf32, #tpu.memory_space<vmem>>, %arg2: memref<33x16xf32, #tpu.memory_space<vmem>>, %arg3: memref<33x1xf32, #tpu.memory_space<vmem>>, %arg4: memref<5x33xf32, #tpu.memory_space<vmem>>, %arg5: memref<144x5xf32, #tpu.memory_space<vmem>>, %arg6: memref<16x72xf32, #tpu.memory_space<vmem>>, %arg7: memref<16x8xf32, #tpu.memory_space<vmem>>) attributes {dimension_semantics = [#tpu.dimension_semantics<parallel>], iteration_bounds = array<i64: 1>, scalar_prefetch = 0 : i64, scratch_operands = 0 : i64, tpu.core_type = #tpu.core_type<tc>, window_params = [{transform_indices = @transform_0, window_bounds = array<i64: 8, 16>}, {pipeline_mode = #tpu.pipeline_mode<synchronous>, transform_indices = @transform_1, window_bounds = array<i64: 33, 16>}, {pipeline_mode = #tpu.pipeline_mode<synchronous>, transform_indices = @transform_2, window_bounds = array<i64: 33, 1>}, {pipeline_mode = #tpu.pipeline_mode<synchronous>, transform_indices = @transform_3, window_bounds = array<i64: 5, 33>}, {pipeline_mode = #tpu.pipeline_mode<synchronous>, transform_indices = @transform_4, window_bounds = array<i64: 144, 5>}, {pipeline_mode = #tpu.pipeline_mode<synchronous>, transform_indices = @transform_5, window_bounds = array<i64: 16, 72>}, {transform_indices = @transform_6, window_bounds = array<i64: 16, 8>}]} {
    %c0 = arith.constant 0 : index
    %c0_0 = arith.constant 0 : index
    %0 = vector.load %arg2[%c0, %c0_0] : memref<33x16xf32, #tpu.memory_space<vmem>>, vector<33x16xf32>
    %c0_1 = arith.constant 0 : index
    %c0_2 = arith.constant 0 : index
    %1 = vector.load %arg1[%c0_1, %c0_2] : memref<8x16xf32, #tpu.memory_space<vmem>>, vector<8x16xf32>
    %cst = arith.constant dense<0.000000e+00> : vector<33x8xf32>
    %2 = tpu.matmul %0, %1, %cst {dimension_numbers = #tpu.dot_dimension_numbers<[1], [1], [0], [0], [0, 0, 1, 0], [], []>} : vector<33x16xf32>, vector<8x16xf32>, vector<33x8xf32> -> vector<33x8xf32>
    %c0_3 = arith.constant 0 : index
    %c0_4 = arith.constant 0 : index
    %3 = vector.load %arg3[%c0_3, %c0_4] : memref<33x1xf32, #tpu.memory_space<vmem>>, vector<33x1xf32>
    %4 = vector.broadcast %3 : vector<33x1xf32> to vector<33x8xf32>
    %5 = arith.addf %2, %4 : vector<33x8xf32>
    %6 = arith.negf %5 : vector<33x8xf32>
    %7 = math.exp %6 : vector<33x8xf32>
    %cst_5 = arith.constant 1.000000e+00 : f32
    %8 = vector.broadcast %cst_5 : f32 to vector<33x8xf32>
    %9 = arith.addf %8, %7 : vector<33x8xf32>
    %10 = arith.divf %8, %9 : vector<33x8xf32>
    %c0_6 = arith.constant 0 : index
    %c0_7 = arith.constant 0 : index
    %11 = vector.load %arg4[%c0_6, %c0_7] : memref<5x33xf32, #tpu.memory_space<vmem>>, vector<5x33xf32>
    %cst_8 = arith.constant dense<0.000000e+00> : vector<5x8xf32>
    %12 = tpu.matmul %11, %10, %cst_8 {dimension_numbers = #tpu.dot_dimension_numbers<[1], [0], [0], [1], [0, 0, 1, 1], [], []>} : vector<5x33xf32>, vector<33x8xf32>, vector<5x8xf32> -> vector<5x8xf32>
    %13 = arith.negf %12 : vector<5x8xf32>
    %14 = math.exp %13 : vector<5x8xf32>
    %cst_9 = arith.constant 1.000000e+00 : f32
    %15 = vector.broadcast %cst_9 : f32 to vector<5x8xf32>
    %16 = arith.addf %15, %14 : vector<5x8xf32>
    %17 = arith.divf %15, %16 : vector<5x8xf32>
    %c0_10 = arith.constant 0 : index
    %c0_11 = arith.constant 0 : index
    %18 = vector.load %arg5[%c0_10, %c0_11] : memref<144x5xf32, #tpu.memory_space<vmem>>, vector<144x5xf32>
    %c0_12 = arith.constant 0 : index
    %c0_13 = arith.constant 0 : index
    %19 = vector.load %arg6[%c0_12, %c0_13] : memref<16x72xf32, #tpu.memory_space<vmem>>, vector<16x72xf32>
    %cst_14 = arith.constant dense<0.000000e+00> : vector<144x8xf32>
    %20 = tpu.matmul %18, %17, %cst_14 {dimension_numbers = #tpu.dot_dimension_numbers<[1], [0], [0], [1], [0, 0, 1, 1], [], []>} : vector<144x5xf32>, vector<5x8xf32>, vector<144x8xf32> -> vector<144x8xf32>
    %21 = vector.extract_strided_slice %20 {offsets = [0, 0], sizes = [72, 8], strides = [1, 1]} : vector<144x8xf32> to vector<72x8xf32>
    %22 = vector.extract_strided_slice %20 {offsets = [72, 0], sizes = [72, 8], strides = [1, 1]} : vector<144x8xf32> to vector<72x8xf32>
    %23 = arith.mulf %21, %22 : vector<72x8xf32>
    %cst_15 = arith.constant dense<0.000000e+00> : vector<16x8xf32>
    %24 = tpu.matmul %19, %23, %cst_15 {dimension_numbers = #tpu.dot_dimension_numbers<[1], [0], [0], [1], [0, 0, 1, 1], [], []>} : vector<16x72xf32>, vector<72x8xf32>, vector<16x8xf32> -> vector<16x8xf32>
    %c0_16 = arith.constant 0 : index
    %c0_17 = arith.constant 0 : index
    %25 = vector.load %arg7[%c0_16, %c0_17] : memref<16x8xf32, #tpu.memory_space<vmem>>, vector<16x8xf32>
    tpu.vector_store %arg7[%c0_16, %c0_17], %24 {strides = array<i32>} : memref<16x8xf32, #tpu.memory_space<vmem>>, vector<16x8xf32>,
    return
  }
  func.func @transform_0(%arg0: i32) -> (i32, i32) {
    %c0_i32 = arith.constant 0 : i32
    %c0_i32_0 = arith.constant 0 : i32
    return %arg0, %c0_i32 : i32, i32
  }
  func.func @transform_1(%arg0: i32) -> (i32, i32) {
    %c0_i32 = arith.constant 0 : i32
    %c0_i32_0 = arith.constant 0 : i32
    %c0_i32_1 = arith.constant 0 : i32
    return %c0_i32, %c0_i32_0 : i32, i32
  }
  func.func @transform_2(%arg0: i32) -> (i32, i32) {
    %c0_i32 = arith.constant 0 : i32
    %c0_i32_0 = arith.constant 0 : i32
    %c0_i32_1 = arith.constant 0 : i32
    return %c0_i32, %c0_i32_0 : i32, i32
  }
  func.func @transform_3(%arg0: i32) -> (i32, i32) {
    %c0_i32 = arith.constant 0 : i32
    %c0_i32_0 = arith.constant 0 : i32
    %c0_i32_1 = arith.constant 0 : i32
    return %c0_i32, %c0_i32_0 : i32, i32
  }
  func.func @transform_4(%arg0: i32) -> (i32, i32) {
    %c0_i32 = arith.constant 0 : i32
    %c0_i32_0 = arith.constant 0 : i32
    %c0_i32_1 = arith.constant 0 : i32
    return %c0_i32, %c0_i32_0 : i32, i32
  }
  func.func @transform_5(%arg0: i32) -> (i32, i32) {
    %c0_i32 = arith.constant 0 : i32
    %c0_i32_0 = arith.constant 0 : i32
    %c0_i32_1 = arith.constant 0 : i32
    return %c0_i32, %c0_i32_0 : i32, i32
  }
  func.func @transform_6(%arg0: i32) -> (i32, i32) {
    %c0_i32 = arith.constant 0 : i32
    %c0_i32_0 = arith.constant 0 : i32
    return %c0_i32, %arg0 : i32, i32
  }
}

</mosaic_0001>

<llo_original>
// kernel: forward.1
$region0: #{forward.1}
  #allocation0 [shape = 'u32[]', space=smem, size = 0x4, offset = 0x4, fixed_abs, tag = 'smem constant byte address 0x4 - core index']
  #allocation1 [shape = 'u32[72,128]{1,0:T(1,128)}', space=vmem, size = 0x9000, scoped, tag = 'internal scratch']
  %s0 = inlined_call_operand.hbm [shape: f32[8,16], index: 0, kind: input, shape index: {}]
  %s1 = inlined_call_operand.hbm [shape: f32[33,16], index: 1, kind: input, shape index: {}]
  %s2 = inlined_call_operand.hbm [shape: f32[33,1], index: 2, kind: input, shape index: {}]
  %s3 = inlined_call_operand.hbm [shape: f32[5,33], index: 3, kind: input, shape index: {}]
  %s4 = inlined_call_operand.hbm [shape: f32[144,5], index: 4, kind: input, shape index: {}]
  %s5 = inlined_call_operand.hbm [shape: f32[16,72], index: 5, kind: input, shape index: {}]
  %s6 = inlined_call_operand.hbm [shape: f32[16,8], index: 6, kind: output, shape index: {}]
  %s7 = sld [smem:[#allocation0]]
  $region58: #{forward.1} parent=0
    _
  %s9 = ssub.s32 1, %s7
  %s10 = scalar_select 0, %s9, %s7
  $region1: #{forward.1} parent=0
    #allocation2 [shape = 'u8[4096]{0}', space=vmem, size = 0x1000, scoped, tag = 'input window, operand 0, single buffered']
    #allocation3 [shape = 's32[1]{0}', space=sflag, size = 0x4, scoped, tag = 'scoped memory for forward.1']
    #allocation4 [shape = 's32[1]{0}', space=sflag, size = 0x4, scoped, tag = 'scoped memory for forward.1']
    #allocation5 [shape = 'u8[20480]{0}', space=vmem, size = 0x5000, scoped, tag = 'input window, operand 1, single buffered']
    #allocation6 [shape = 's32[1]{0}', space=sflag, size = 0x4, scoped, tag = 'scoped memory for forward.1']
    #allocation7 [shape = 'u8[20480]{0}', space=vmem, size = 0x5000, scoped, tag = 'input window, operand 2, single buffered']
    #allocation8 [shape = 'u8[4096]{0}', space=vmem, size = 0x1000, scoped, tag = 'input window, operand 3, single buffered']
    #allocation9 [shape = 's32[1]{0}', space=sflag, size = 0x4, scoped, tag = 'scoped memory for forward.1']
    #allocation10 [shape = 'u8[73728]{0}', space=vmem, size = 0x12000, scoped, tag = 'input window, operand 4, single buffered']
    #allocation11 [shape = 'u8[8192]{0}', space=vmem, size = 0x2000, scoped, tag = 'input window, operand 5, single buffered']
    #allocation12 [shape = 's32[1]{0}', space=sflag, size = 0x4, scoped, tag = 'scoped memory for forward.1']
    #allocation13 [shape = 'u8[8192]{0}', space=vmem, size = 0x2000, scoped, tag = 'output window, operand 0, single buffered']
    %11 = vsyncpa [#allocation3], 0
    %12 = vsyncpa [#allocation6], 0
    %13 = vsyncpa [#allocation9], 0
    %14 = vsyncpa [#allocation12], 0
    %15 = vsyncpa [#allocation4], 0
    // Predicated region
    $region2: #{forward.1} parent=1 // pred_check
      _
    $region3: #{forward.1} parent=1 // pred_check_branch
      %17 = sbr.rel (0) target = $region5
    $region4: #{forward.1} parent=1 // pred_region
      %19 = vsyncadd [#allocation3], 0
      %s21 = sshll.u32 %s0, 4
      %s22 = int_to_ptr.hbm [resolvable:$true] %s21
      %s23 = sshll.u32 [#allocation2], 4
      %s24 = int_to_ptr.vmem [resolvable:$true] %s23
      %26 = dma.hbm_to_vmem [thread:$0]  %s22, 128, %s24, [#allocation3]
    $region5: #{forward.1} parent=1 // pred_fallthru
      _
    // Predicated region
    $region6: #{forward.1} parent=1 // pred_check
      _
    $region7: #{forward.1} parent=1 // pred_check_branch
      %28 = sbr.rel (0) target = $region9
    $region8: #{forward.1} parent=1 // pred_region
      %30 = vsyncadd [#allocation6], 0
      %s31 = sshll.u32 %s1, 4
      %s32 = int_to_ptr.hbm [resolvable:$true] %s31
      %s33 = sshll.u32 [#allocation5], 4
      %s34 = int_to_ptr.vmem [resolvable:$true] %s33
      %39 = dma.hbm_to_vmem [thread:$0]  %s32, 640, %s34, [#allocation6], 128, 128, 8
    $region9: #{forward.1} parent=1 // pred_fallthru
      _
    // Predicated region
    $region10: #{forward.1} parent=1 // pred_check
      _
    $region11: #{forward.1} parent=1 // pred_check_branch
      %41 = sbr.rel (0) target = $region13
    $region12: #{forward.1} parent=1 // pred_region
      %43 = vsyncadd [#allocation6], 0
      %s44 = sshll.u32 %s2, 4
      %s45 = int_to_ptr.hbm [resolvable:$true] %s44
      %s46 = sshll.u32 [#allocation7], 4
      %s47 = int_to_ptr.vmem [resolvable:$true] %s46
      %52 = dma.hbm_to_vmem [thread:$0]  %s45, 640, %s47, [#allocation6], 128, 128, 8
    $region13: #{forward.1} parent=1 // pred_fallthru
      _
    // Predicated region
    $region14: #{forward.1} parent=1 // pred_check
      _
    $region15: #{forward.1} parent=1 // pred_check_branch
      %54 = sbr.rel (0) target = $region17
    $region16: #{forward.1} parent=1 // pred_region
      %56 = vsyncadd [#allocation9], 0
      %s58 = sshll.u32 %s3, 4
      %s59 = int_to_ptr.hbm [resolvable:$true] %s58
      %s60 = sshll.u32 [#allocation8], 4
      %s61 = int_to_ptr.vmem [resolvable:$true] %s60
      %63 = dma.hbm_to_vmem [thread:$0]  %s59, 128, %s61, [#allocation9]
    $region17: #{forward.1} parent=1 // pred_fallthru
      _
    // Predicated region
    $region18: #{forward.1} parent=1 // pred_check
      _
    $region19: #{forward.1} parent=1 // pred_check_branch
      %65 = sbr.rel (0) target = $region21
    $region20: #{forward.1} parent=1 // pred_region
      %67 = vsyncadd [#allocation9], 0
      %s68 = sshll.u32 %s4, 4
      %s69 = int_to_ptr.hbm [resolvable:$true] %s68
      %s70 = sshll.u32 [#allocation10], 4
      %s71 = int_to_ptr.vmem [resolvable:$true] %s70
      %76 = dma.hbm_to_vmem [thread:$0]  %s69, 2304, %s71, [#allocation9], 128, 128, 8
    $region21: #{forward.1} parent=1 // pred_fallthru
      _
    // Predicated region
    $region22: #{forward.1} parent=1 // pred_check
      _
    $region23: #{forward.1} parent=1 // pred_check_branch
      %78 = sbr.rel (0) target = $region25
    $region24: #{forward.1} parent=1 // pred_region
      %80 = vsyncadd [#allocation12], 0
      %s81 = sshll.u32 %s5, 4
      %s82 = int_to_ptr.hbm [resolvable:$true] %s81
      %s83 = sshll.u32 [#allocation11], 4
      %s84 = int_to_ptr.vmem [resolvable:$true] %s83
      %89 = dma.hbm_to_vmem [thread:$0]  %s82, 256, %s84, [#allocation12], 128, 128, 8
    $region25: #{forward.1} parent=1 // pred_fallthru
      _
    // Predicated region
    $region26: #{forward.1} parent=1 // pred_check
      _
    $region27: #{forward.1} parent=1 // pred_check_branch
      %91 = sbr.rel (0) target = $region29
    $region28: #{forward.1} parent=1 // pred_region
      %93 = dma.done [#allocation3], 128
    $region29: #{forward.1} parent=1 // pred_fallthru
      _
    // Predicated region
    $region30: #{forward.1} parent=1 // pred_check
      _
    $region31: #{forward.1} parent=1 // pred_check_branch
      %95 = sbr.rel (0) target = $region33
    $region32: #{forward.1} parent=1 // pred_region
      %97 = dma.done [#allocation6], 640
    $region33: #{forward.1} parent=1 // pred_fallthru
      _
    // Predicated region
    $region34: #{forward.1} parent=1 // pred_check
      _
    $region35: #{forward.1} parent=1 // pred_check_branch
      %99 = sbr.rel (0) target = $region37
    $region36: #{forward.1} parent=1 // pred_region
      %101 = dma.done [#allocation6], 640
    $region37: #{forward.1} parent=1 // pred_fallthru
      _
    // Predicated region
    $region38: #{forward.1} parent=1 // pred_check
      _
    $region39: #{forward.1} parent=1 // pred_check_branch
      %103 = sbr.rel (0) target = $region41
    $region40: #{forward.1} parent=1 // pred_region
      %105 = dma.done [#allocation9], 128
    $region41: #{forward.1} parent=1 // pred_fallthru
      _
    // Predicated region
    $region42: #{forward.1} parent=1 // pred_check
      _
    $region43: #{forward.1} parent=1 // pred_check_branch
      %107 = sbr.rel (0) target = $region45
    $region44: #{forward.1} parent=1 // pred_region
      %109 = dma.done [#allocation9], 2304
    $region45: #{forward.1} parent=1 // pred_fallthru
      _
    // Predicated region
    $region46: #{forward.1} parent=1 // pred_check
      _
    $region47: #{forward.1} parent=1 // pred_check_branch
      %111 = sbr.rel (0) target = $region49
    $region48: #{forward.1} parent=1 // pred_region
      %113 = dma.done [#allocation12], 256
    $region49: #{forward.1} parent=1 // pred_fallthru
      _
    %v114 = vld [vmem:[#allocation5] sm:$0xff]
    %v115 = vld [vmem:[#allocation5 + $0x8] sm:$0xff]
    %v116 = vld [vmem:[#allocation5 + $0x10] sm:$0xff]
    %v117 = vld [vmem:[#allocation5 + $0x18] sm:$0xff]
    %v118 = vld [vmem:[#allocation5 + $0x20] sm:$0x1]
    %v119 = vld [vmem:[#allocation2] sm:$0xff]
    %v120 = vld [vmem:[#allocation7] sm:$0xff]
    %v121 = vld [vmem:[#allocation7 + $0x8] sm:$0xff]
    %v122 = vld [vmem:[#allocation7 + $0x10] sm:$0xff]
    %v123 = vld [vmem:[#allocation7 + $0x18] sm:$0xff]
    %v124 = vld [vmem:[#allocation7 + $0x20] sm:$0x1]
    %126 = vset.pattern.permute.xlu0 0
    %127 = vperm.xlu0 %126, %v120
    %v128 = vpop.permute.xlu0 %127
    %131 = vset.pattern.permute.xlu0 0
    %132 = vperm.xlu0 %131, %v121
    %v133 = vpop.permute.xlu0 %132
    %136 = vset.pattern.permute.xlu0 0
    %137 = vperm.xlu0 %136, %v122
    %v138 = vpop.permute.xlu0 %137
    %141 = vset.pattern.permute.xlu0 0
    %142 = vperm.xlu0 %141, %v123
    %v143 = vpop.permute.xlu0 %142
    %146 = vset.pattern.permute.xlu0 0
    %147 = vperm.xlu0 %146, %v124
    %v148 = vpop.permute.xlu0 %147
    %vm150 = vcmask 130048
    %v152 = vsel %vm150, %v114, 0
    %v155 = vsel %vm150, %v115, 0
    %v158 = vsel %vm150, %v116, 0
    %v161 = vsel %vm150, %v117, 0
    %v164 = vsel %vm150, %v118, 0
    %v167 = vsel %vm150, %v119, 0
    %169 = vmatpush.xpose.msra.mxu0 0.0
    %170 = vmatpush.xpose.msra.mxu0 0.0
    %171 = vmatpush.xpose.msra.mxu0 0.0
    %172 = vmatpush.xpose.msra.mxu0 0.0
    %173 = vmatpush.xpose.msra.mxu0 0.0
    %174 = vmatpush.xpose.msra.mxu0 0.0
    %175 = vmatpush.xpose.msra.mxu0 0.0
    %176 = vmatpush.xpose.msra.mxu0 0.0
    %177 = vmatpush.xpose.msra.mxu0 0.0
    %178 = vmatpush.xpose.msra.mxu0 0.0
    %179 = vmatpush.xpose.msra.mxu0 0.0
    %180 = vmatpush.xpose.msra.mxu0 0.0
    %181 = vmatpush.xpose.msra.mxu0 0.0
    %182 = vmatpush.xpose.msra.mxu0 0.0
    %183 = vmatpush.xpose.msra.mxu0 0.0
    %184 = vmatpush.xpose.msra.mxu0 %v167
    %185 = vmatmul.f32.gmra.mxu0 %v152
    %v186 = vpop.f32.mrf.mxu0
    %v187 = vadd.f32 %v128, %v186
    %188 = vmatmul.f32.gmra.mxu0 %v155
    %v189 = vpop.f32.mrf.mxu0
    %v190 = vadd.f32 %v133, %v189
    %191 = vmatmul.f32.gmra.mxu0 %v158
    %v192 = vpop.f32.mrf.mxu0
    %v193 = vadd.f32 %v138, %v192
    %194 = vmatmul.f32.gmra.mxu0 %v161
    %v195 = vpop.f32.mrf.mxu0
    %v196 = vadd.f32 %v143, %v195
    %197 = vmatmul.f32.gmra.mxu0 %v164
    %v198 = vpop.f32.mrf.mxu0
    %v199 = vadd.f32 %v148, %v198
    %200 = vdwg.mxu0
    %v201 = vxor.u32 %v187, 2147483648
    %v202 = vxor.u32 %v190, 2147483648
    %v203 = vxor.u32 %v193, 2147483648
    %v204 = vxor.u32 %v196, 2147483648
    %v205 = vxor.u32 %v199, 2147483648
    %v206 = vmul.f32 %v201, 1.442695
    %v207 = vpow.pop %v206
    %v208 = vmul.f32 %v202, 1.442695
    %v209 = vpow.pop %v208
    %v210 = vmul.f32 %v203, 1.442695
    %v211 = vpow.pop %v210
    %v212 = vmul.f32 %v204, 1.442695
    %v213 = vpow.pop %v212
    %v214 = vmul.f32 %v205, 1.442695
    %v215 = vpow.pop %v214
    %v216 = vadd.f32 %v207, 1.0
    %v217 = vadd.f32 %v209, 1.0
    %v218 = vadd.f32 %v211, 1.0
    %v219 = vadd.f32 %v213, 1.0
    %v220 = vadd.f32 %v215, 1.0
    %v221 = vrcp.pop %v216
    %v222 = vmul.f32 %v216, %v221
    %v223 = vsub.f32 1.0, %v222
    %v224 = vmul.f32 %v221, %v223
    %v225 = vadd.f32 %v221, %v224
    %vm226 = vweird.f32 %v216
    %vm227 = vweird.f32 %v221
    %vm228 = vmor %vm226, %vm227
    %v229 = vsel %vm228, %v221, %v225
    %v230 = vand.u32 2147483647, %v216
    %vm231 = vcmp.eq.f32.partialorder %v230, 8.507059e+37
    %v232 = vand.u32 %v216, 2147483648
    %v233 = vor.u32 1.1754944e-38, %v232
    %v234 = vsel %vm231, %v233, %v229
    %v235 = vmul.f32 1.0, %v234
    %v236 = vrcp.pop %v217
    %v237 = vmul.f32 %v217, %v236
    %v238 = vsub.f32 1.0, %v237
    %v239 = vmul.f32 %v236, %v238
    %v240 = vadd.f32 %v236, %v239
    %vm241 = vweird.f32 %v217
    %vm242 = vweird.f32 %v236
    %vm243 = vmor %vm241, %vm242
    %v244 = vsel %vm243, %v236, %v240
    %v245 = vand.u32 2147483647, %v217
    %vm246 = vcmp.eq.f32.partialorder %v245, 8.507059e+37
    %v247 = vand.u32 %v217, 2147483648
    %v248 = vor.u32 1.1754944e-38, %v247
    %v249 = vsel %vm246, %v248, %v244
    %v250 = vmul.f32 1.0, %v249
    %v251 = vrcp.pop %v218
    %v252 = vmul.f32 %v218, %v251
    %v253 = vsub.f32 1.0, %v252
    %v254 = vmul.f32 %v251, %v253
    %v255 = vadd.f32 %v251, %v254
    %vm256 = vweird.f32 %v218
    %vm257 = vweird.f32 %v251
    %vm258 = vmor %vm256, %vm257
    %v259 = vsel %vm258, %v251, %v255
    %v260 = vand.u32 2147483647, %v218
    %vm261 = vcmp.eq.f32.partialorder %v260, 8.507059e+37
    %v262 = vand.u32 %v218, 2147483648
    %v263 = vor.u32 1.1754944e-38, %v262
    %v264 = vsel %vm261, %v263, %v259
    %v265 = vmul.f32 1.0, %v264
    %v266 = vrcp.pop %v219
    %v267 = vmul.f32 %v219, %v266
    %v268 = vsub.f32 1.0, %v267
    %v269 = vmul.f32 %v266, %v268
    %v270 = vadd.f32 %v266, %v269
    %vm271 = vweird.f32 %v219
    %vm272 = vweird.f32 %v266
    %vm273 = vmor %vm271, %vm272
    %v274 = vsel %vm273, %v266, %v270
    %v275 = vand.u32 2147483647, %v219
    %vm276 = vcmp.eq.f32.partialorder %v275, 8.507059e+37
    %v277 = vand.u32 %v219, 2147483648
    %v278 = vor.u32 1.1754944e-38, %v277
    %v279 = vsel %vm276, %v278, %v274
    %v280 = vmul.f32 1.0, %v279
    %v281 = vrcp.pop %v220
    %v282 = vmul.f32 %v220, %v281
    %v283 = vsub.f32 1.0, %v282
    %v284 = vmul.f32 %v281, %v283
    %v285 = vadd.f32 %v281, %v284
    %vm286 = vweird.f32 %v220
    %vm287 = vweird.f32 %v281
    %vm288 = vmor %vm286, %vm287
    %v289 = vsel %vm288, %v281, %v285
    %v290 = vand.u32 2147483647, %v220
    %vm291 = vcmp.eq.f32.partialorder %v290, 8.507059e+37
    %v292 = vand.u32 %v220, 2147483648
    %v293 = vor.u32 1.1754944e-38, %v292
    %v294 = vsel %vm291, %v293, %v289
    %v295 = vmul.f32 1.0, %v294
    %v296 = vld [vmem:[#allocation8] sm:$0x1f]
    %vm297 = vcmask 269312
    %v299 = vsel %vm297, %v296, 0
    %vm301 = vcmask 1040384
    %v303 = vsel %vm301, %v295, 0
    %305 = vmatpush.msra.mxu0 0.0
    %306 = vmatpush.msra.mxu0 0.0
    %307 = vmatpush.msra.mxu0 0.0
    %308 = vmatpush.msra.mxu0 0.0
    %309 = vmatpush.msra.mxu0 0.0
    %310 = vmatpush.msra.mxu0 0.0
    %311 = vmatpush.msra.mxu0 0.0
    %312 = vmatpush.msra.mxu0 0.0
    %313 = vmatpush.msra.mxu0 0.0
    %314 = vmatpush.msra.mxu0 0.0
    %315 = vmatpush.msra.mxu0 0.0
    %316 = vmatpush.msra.mxu0 %v303
    %317 = vmatpush.msra.mxu0 %v280
    %318 = vmatpush.msra.mxu0 %v265
    %319 = vmatpush.msra.mxu0 %v250
    %320 = vmatpush.msra.mxu0 %v235
    %321 = vmatmul.f32.gmra.mxu0 %v299
    %v322 = vpop.f32.mrf.mxu0
    %v323 = vadd.f32 0.0, %v322
    %324 = vdwg.mxu0
    %v325 = vxor.u32 %v323, 2147483648
    %v326 = vmul.f32 %v325, 1.442695
    %v327 = vpow.pop %v326
    %v328 = vadd.f32 %v327, 1.0
    %v329 = vrcp.pop %v328
    %v330 = vmul.f32 %v328, %v329
    %v331 = vsub.f32 1.0, %v330
    %v332 = vmul.f32 %v329, %v331
    %v333 = vadd.f32 %v329, %v332
    %vm334 = vweird.f32 %v328
    %vm335 = vweird.f32 %v329
    %vm336 = vmor %vm334, %vm335
    %v337 = vsel %vm336, %v329, %v333
    %v338 = vand.u32 2147483647, %v328
    %vm339 = vcmp.eq.f32.partialorder %v338, 8.507059e+37
    %v340 = vand.u32 %v328, 2147483648
    %v341 = vor.u32 1.1754944e-38, %v340
    %v342 = vsel %vm339, %v341, %v337
    %v343 = vmul.f32 1.0, %v342
    %v344 = vld [vmem:[#allocation10] sm:$0xff]
    %v345 = vld [vmem:[#allocation10 + $0x8] sm:$0xff]
    %v346 = vld [vmem:[#allocation10 + $0x10] sm:$0xff]
    %v347 = vld [vmem:[#allocation10 + $0x18] sm:$0xff]
    %v348 = vld [vmem:[#allocation10 + $0x20] sm:$0xff]
    %v349 = vld [vmem:[#allocation10 + $0x28] sm:$0xff]
    %v350 = vld [vmem:[#allocation10 + $0x30] sm:$0xff]
    %v351 = vld [vmem:[#allocation10 + $0x38] sm:$0xff]
    %v352 = vld [vmem:[#allocation10 + $0x40] sm:$0xff]
    %v353 = vld [vmem:[#allocation10 + $0x48] sm:$0xff]
    %v354 = vld [vmem:[#allocation10 + $0x50] sm:$0xff]
    %v355 = vld [vmem:[#allocation10 + $0x58] sm:$0xff]
    %v356 = vld [vmem:[#allocation10 + $0x60] sm:$0xff]
    %v357 = vld [vmem:[#allocation10 + $0x68] sm:$0xff]
    %v358 = vld [vmem:[#allocation10 + $0x70] sm:$0xff]
    %v359 = vld [vmem:[#allocation10 + $0x78] sm:$0xff]
    %v360 = vld [vmem:[#allocation10 + $0x80] sm:$0xff]
    %v361 = vld [vmem:[#allocation10 + $0x88] sm:$0xff]
    %v362 = vld [vmem:[#allocation11] sm:$0xff]
    %v363 = vld [vmem:[#allocation11 + $0x8] sm:$0xff]
    %vm364 = vcmask 39936
    %v366 = vsel %vm364, %v344, 0
    %v369 = vsel %vm364, %v345, 0
    %v372 = vsel %vm364, %v346, 0
    %v375 = vsel %vm364, %v347, 0
    %v378 = vsel %vm364, %v348, 0
    %v381 = vsel %vm364, %v349, 0
    %v384 = vsel %vm364, %v350, 0
    %v387 = vsel %vm364, %v351, 0
    %v390 = vsel %vm364, %v352, 0
    %v393 = vsel %vm364, %v353, 0
    %v396 = vsel %vm364, %v354, 0
    %v399 = vsel %vm364, %v355, 0
    %v402 = vsel %vm364, %v356, 0
    %v405 = vsel %vm364, %v357, 0
    %v408 = vsel %vm364, %v358, 0
    %v411 = vsel %vm364, %v359, 0
    %v414 = vsel %vm364, %v360, 0
    %v417 = vsel %vm364, %v361, 0
    %vm419 = vcmask 1044480
    %v421 = vsel %vm419, %v343, 0
    %423 = vmatpush.msra.mxu0 0.0
    %424 = vmatpush.msra.mxu0 0.0
    %425 = vmatpush.msra.mxu0 0.0
    %426 = vmatpush.msra.mxu0 0.0
    %427 = vmatpush.msra.mxu0 0.0
    %428 = vmatpush.msra.mxu0 0.0
    %429 = vmatpush.msra.mxu0 0.0
    %430 = vmatpush.msra.mxu0 0.0
    %431 = vmatpush.msra.mxu0 0.0
    %432 = vmatpush.msra.mxu0 0.0
    %433 = vmatpush.msra.mxu0 0.0
    %434 = vmatpush.msra.mxu0 0.0
    %435 = vmatpush.msra.mxu0 0.0
    %436 = vmatpush.msra.mxu0 0.0
    %437 = vmatpush.msra.mxu0 0.0
    %438 = vmatpush.msra.mxu0 %v421
    %439 = vmatmul.f32.gmra.mxu0 %v366
    %v440 = vpop.f32.mrf.mxu0
    %v441 = vadd.f32 0.0, %v440
    %442 = vmatmul.f32.gmra.mxu0 %v369
    %v443 = vpop.f32.mrf.mxu0
    %v444 = vadd.f32 0.0, %v443
    %445 = vmatmul.f32.gmra.mxu0 %v372
    %v446 = vpop.f32.mrf.mxu0
    %v447 = vadd.f32 0.0, %v446
    %448 = vmatmul.f32.gmra.mxu0 %v375
    %v449 = vpop.f32.mrf.mxu0
    %v450 = vadd.f32 0.0, %v449
    %451 = vmatmul.f32.gmra.mxu0 %v378
    %v452 = vpop.f32.mrf.mxu0
    %v453 = vadd.f32 0.0, %v452
    %454 = vmatmul.f32.gmra.mxu0 %v381
    %v455 = vpop.f32.mrf.mxu0
    %v456 = vadd.f32 0.0, %v455
    %457 = vmatmul.f32.gmra.mxu0 %v384
    %v458 = vpop.f32.mrf.mxu0
    %v459 = vadd.f32 0.0, %v458
    %460 = vmatmul.f32.gmra.mxu0 %v387
    %v461 = vpop.f32.mrf.mxu0
    %v462 = vadd.f32 0.0, %v461
    %463 = vmatmul.f32.gmra.mxu0 %v390
    %v464 = vpop.f32.mrf.mxu0
    %v465 = vadd.f32 0.0, %v464
    %466 = vmatmul.f32.gmra.mxu0 %v393
    %v467 = vpop.f32.mrf.mxu0
    %v468 = vadd.f32 0.0, %v467
    %469 = vmatmul.f32.gmra.mxu0 %v396
    %v470 = vpop.f32.mrf.mxu0
    %v471 = vadd.f32 0.0, %v470
    %472 = vmatmul.f32.gmra.mxu0 %v399
    %v473 = vpop.f32.mrf.mxu0
    %v474 = vadd.f32 0.0, %v473
    %475 = vmatmul.f32.gmra.mxu0 %v402
    %v476 = vpop.f32.mrf.mxu0
    %v477 = vadd.f32 0.0, %v476
    %478 = vmatmul.f32.gmra.mxu0 %v405
    %v479 = vpop.f32.mrf.mxu0
    %v480 = vadd.f32 0.0, %v479
    %481 = vmatmul.f32.gmra.mxu0 %v408
    %v482 = vpop.f32.mrf.mxu0
    %v483 = vadd.f32 0.0, %v482
    %484 = vmatmul.f32.gmra.mxu0 %v411
    %v485 = vpop.f32.mrf.mxu0
    %v486 = vadd.f32 0.0, %v485
    %487 = vmatmul.f32.gmra.mxu0 %v414
    %v488 = vpop.f32.mrf.mxu0
    %v489 = vadd.f32 0.0, %v488
    %490 = vmatmul.f32.gmra.mxu0 %v417
    %v491 = vpop.f32.mrf.mxu0
    %v492 = vadd.f32 0.0, %v491
    %493 = vdwg.mxu0
    %v494 = vmul.f32 %v441, %v468
    %v495 = vmul.f32 %v444, %v471
    %v496 = vmul.f32 %v447, %v474
    %v497 = vmul.f32 %v450, %v477
    %v498 = vmul.f32 %v453, %v480
    %v499 = vmul.f32 %v456, %v483
    %v500 = vmul.f32 %v459, %v486
    %v501 = vmul.f32 %v462, %v489
    %v502 = vmul.f32 %v465, %v492
    %vm503 = vcmask 588800
    %v505 = vsel %vm503, %v362, 0
    %v508 = vsel %vm503, %v363, 0
    %510 = vmatpush.msra.mxu0 0.0
    %511 = vmatpush.msra.mxu0 0.0
    %512 = vmatpush.msra.mxu0 0.0
    %513 = vmatpush.msra.mxu0 0.0
    %514 = vmatpush.msra.mxu0 0.0
    %515 = vmatpush.msra.mxu0 0.0
    %516 = vmatpush.msra.mxu0 0.0
    %517 = vmatpush.msra.mxu0 %v502
    %518 = vmatpush.msra.mxu0 %v501
    %519 = vmatpush.msra.mxu0 %v500
    %520 = vmatpush.msra.mxu0 %v499
    %521 = vmatpush.msra.mxu0 %v498
    %522 = vmatpush.msra.mxu0 %v497
    %523 = vmatpush.msra.mxu0 %v496
    %524 = vmatpush.msra.mxu0 %v495
    %525 = vmatpush.msra.mxu0 %v494
    %526 = vmatmul.f32.gmra.mxu0 %v505
    %v527 = vpop.f32.mrf.mxu0
    %v528 = vadd.f32 0.0, %v527
    %529 = vmatmul.f32.gmra.mxu0 %v508
    %v530 = vpop.f32.mrf.mxu0
    %v531 = vadd.f32 0.0, %v530
    %532 = vdwg.mxu0
    %vm533 = vcmask 64512
    %534 = vst.msk [vmem:[#allocation13] sm:$0xff] %vm533, %v528
    %535 = vst.msk [vmem:[#allocation13 + $0x8] sm:$0xff] %vm533, %v531
    // Predicated region
    $region50: #{forward.1} parent=1 // pred_check
      _
    $region51: #{forward.1} parent=1 // pred_check_branch
      %537 = sbr.rel (0) target = $region53
    $region52: #{forward.1} parent=1 // pred_region
      %539 = vsyncadd [#allocation4], 0
      %s540 = sshll.u32 [#allocation13], 4
      %s541 = int_to_ptr.vmem [resolvable:$true] %s540
      %s542 = sshll.u32 %s6, 4
      %s543 = int_to_ptr.hbm [resolvable:$true] %s542
      %548 = dma.vmem_to_hbm [thread:$0]  %s541, 256, %s543, [#allocation4], 128, 128, 8
    $region53: #{forward.1} parent=1 // pred_fallthru
      _
    // Predicated region
    $region54: #{forward.1} parent=1 // pred_check
      _
    $region55: #{forward.1} parent=1 // pred_check_branch
      %550 = sbr.rel (0) target = $region57
    $region56: #{forward.1} parent=1 // pred_region
      %552 = dma.done [#allocation4], 256
    $region57: #{forward.1} parent=1 // pred_fallthru
      _
    %553 = vsyncpa [#allocation3], 1
    %554 = vsyncpa [#allocation6], 1
    %555 = vsyncpa [#allocation9], 1
    %556 = vsyncpa [#allocation12], 1
    %557 = vsyncpa [#allocation4], 1

</llo_original>
